<compile_context>
chip_gen: v5e
topology: v5e:2x2
jax: 0.10.0
libtpu: 0.0.40
codegen_flags: <defaults>
</compile_context>

<pallas_src>
import jax
import jax.numpy as jnp
from jax import lax
from jax.experimental import pallas as pl
from jax.experimental.pallas import tpu as pltpu

MARGIN = 0.45
EPSILON = 1e-8
NORM_EPS = 1e-12  # F.normalize default eps


def _l2_normalize(x):
    # F.normalize(x, p=2, dim=1): x / clamp_min(||x||, eps)
    norm = jnp.sqrt(jnp.sum(x * x, axis=1, keepdims=True))
    return x * (1.0 / jnp.maximum(norm, NORM_EPS))


def _row_group_sum(x):
    """(R, C) -> (8, C): sum groups of 8 rows. Pure vreg adds (no cross-lane work)."""
    r = x.shape[0]
    acc = x[0:8, :]
    for g in range(1, r // 8):
        acc = acc + x[g * 8:(g + 1) * 8, :]
    return acc


def _make_kernel(tm, tn):
    def kernel(im_ref, s_ref, d1_ref, d2_ref, mat_ref, out_ref):
        i = pl.program_id(0)
        j = pl.program_id(1)

        # Output block index depends only on i -> block is VMEM-resident across
        # the j sweep; init it once per row block.
        @pl.when(j == 0)
        def _init():
            out_ref[...] = jnp.zeros_like(out_ref)

        f32 = jnp.float32
        dn = (((1,), (1,)), ((), ()))  # contract the feature axis: A . B^T
        dots = lax.dot_general(im_ref[...], s_ref[...], dn,
                               preferred_element_type=f32)
        # Rows are unit-norm (wrapper normalization), so
        # ||im_n[a] - s_n[b]||^2 == 2 - 2*<im_n[a], s_n[b]>  (error ~1e-7).
        scores = 2.0 - 2.0 * dots                       # (tm, tn)

        d1 = d1_ref[...]                                # (tm, 1): diag[a] (diff-square, exact)
        d2 = d2_ref[...]                                # (1, tn): diag[b]
        mask3 = mat_ref[...] != 0                       # matrix.eq(1), binarized in wrapper

        raw_s = jnp.maximum(MARGIN + d1 - scores, 0.0)
        raw_im = jnp.maximum(MARGIN + d2 - scores, 0.0)
        # TODO(synk): PyTorch's mask1/mask2 (scores.eq(diag)) also zero exact
        # duplicate-row ties; with MXU-form scores vs the diff-square diagonal
        # those equalities essentially never fire, so only the diagonal
        # (injected eye below) is reliably masked.
        mask_s_base = (scores == d1) | mask3

        # mask3 count (for the denominator), per row block.
        out_ref[0, 1, :, :] += _row_group_sum(mask3.astype(f32))

        def accumulate(mask_s, mask_im):
            cost = jnp.where(mask_s, 0.0, raw_s) + jnp.where(mask_im, 0.0, raw_im)
            out_ref[0, 0, :, :] += _row_group_sum(cost)

        # Only tiles that intersect the global diagonal pay for the eye mask.
        on_diag = (i * tm < (j + 1) * tn) & (j * tn < (i + 1) * tm)

        @pl.when(on_diag)
        def _diag_tile():
            rmc = (lax.broadcasted_iota(jnp.int32, (tm, tn), 0)
                   - lax.broadcasted_iota(jnp.int32, (tm, tn), 1))
            eye = rmc == (j * tn - i * tm)
            accumulate(mask_s_base | eye, mask3 | eye)

        @pl.when(jnp.logical_not(on_diag))
        def _off_diag_tile():
            accumulate(mask_s_base, mask3)

    return kernel


def _pick_block(dim, preferred, align):
    """Largest multiple of `align` that divides `dim` and is <= `preferred`, else full `dim`."""
    if dim <= preferred:
        return dim
    t = (preferred // align) * align
    while t >= align:
        if dim % t == 0:
            return t
        t -= align
    return dim  # NOTE: falls back to the full dim for awkward B; pad B upstream if huge.


def contrastive_loss(im, s, matrix, *, block_rows=None, block_cols=None,
                     use_bf16_matmul=None):
    """im, s: (B, D) embeddings; matrix: (B, B) 0/1 match matrix. Returns f32 scalar loss."""
    B, D = im.shape
    assert s.shape == (B, D) and matrix.shape == (B, B)

    f32 = jnp.float32
    # Hoisted out of the kernel: normalization, the score diagonal, matrix.eq(1).
    im_n = _l2_normalize(im.astype(f32))
    s_n = _l2_normalize(s.astype(f32))
    diff = im_n - s_n
    diag = jnp.sum(diff * diff, axis=1)          # scores.diag() in diff-square form (exact)
    d1_col = diag.reshape(B, 1)
    d2_row = diag.reshape(1, B)
    mat_i8 = (matrix == 1).astype(jnp.int8)      # 4x less HBM traffic than f32

    # Row tiles: multiples of 32 (int8 tile / f32 sublanes); col tiles: multiples of 128.
    tm = block_rows if block_rows is not None else _pick_block(B, 256, 32)
    tn = block_cols if block_cols is not None else _pick_block(B, 512, 128)
    assert B % tm == 0 and B % tn == 0, (B, tm, tn)
    assert tm % 8 == 0, tm
    n_i, n_j = B // tm, B // tn

    if use_bf16_matmul is None:
        use_bf16_matmul = D >= 256               # bf16 MXU only worth it for large D
    mm_dtype = jnp.bfloat16 if use_bf16_matmul else f32
    im_mm = im_n.astype(mm_dtype)
    s_mm = s_n.astype(mm_dtype)

    kernel = _make_kernel(tm, tn)
    partials = pl.pallas_call(
        kernel,
        out_shape=jax.ShapeDtypeStruct((n_i, 2, 8, tn), f32),
        grid=(n_i, n_j),
        in_specs=[
            pl.BlockSpec((tm, D), lambda i, j: (i, 0)),    # normalized im, rows I
            pl.BlockSpec((tn, D), lambda i, j: (j, 0)),    # normalized s,  rows J (columns)
            pl.BlockSpec((tm, 1), lambda i, j: (i, 0)),    # d1: diag for rows I
            pl.BlockSpec((1, tn), lambda i, j: (0, j)),    # d2: diag for cols J
            pl.BlockSpec((tm, tn), lambda i, j: (i, j)),   # int8 match-matrix tile
        ],
        out_specs=pl.BlockSpec((1, 2, 8, tn), lambda i, j: (i, 0, 0, 0)),
        compiler_params=pltpu.CompilerParams(
            dimension_semantics=("parallel", "arbitrary"),
            vmem_limit_bytes=32 * 1024 * 1024,
        ),
    )(im_mm, s_mm, d1_col, d2_row, mat_i8)

    # Final cross-lane reductions + divide happen once, here (not per tile).
    numerator = jnp.sum(partials[:, 0])
    match_count = jnp.sum(partials[:, 1])
    denominator = jnp.float32(B * B - B) - match_count
    denominator = jnp.where(denominator == 0.0, jnp.float32(EPSILON), denominator)
    return numerator / denominator


def _reference_loss(im, s, matrix):
    # Pure-JAX reference mirroring the PyTorch forward (l2, no max_violation).
    im = im.astype(jnp.float32)
    s = s.astype(jnp.float32)
    im_n = im / jnp.maximum(jnp.linalg.norm(im, axis=1, keepdims=True), NORM_EPS)
    s_n = s / jnp.maximum(jnp.linalg.norm(s, axis=1, keepdims=True), NORM_EPS)
    diff = im_n[:, None, :] - s_n[None, :, :]
    scores = jnp.sum(diff * diff, axis=-1)                  # (B, B)
    diag = jnp.diag(scores)[:, None]
    d1, d2 = diag, diag.T
    cost_s = jnp.maximum(MARGIN + d1 - scores, 0.0)
    cost_im = jnp.maximum(MARGIN + d2 - scores, 0.0)
    mask1 = scores == d1
    mask2 = mask1.T
    mask3 = matrix == 1.0
    cost_s = jnp.where(mask1 | mask3, 0.0, cost_s)
    cost_im = jnp.where(mask2 | mask3, 0.0, cost_im)
    B = im.shape[0]
    num = jnp.sum(cost_s) + jnp.sum(cost_im)
    den = jnp.float32(B * B - B) - jnp.sum(mask3.astype(jnp.float32))
    den = jnp.where(den == 0.0, jnp.float32(EPSILON), den)
    return num / den


if __name__ == "__main__":
    def make_inputs(B, D, key):
        k_im, k_s, k_m = jax.random.split(key, 3)
        im = jax.random.normal(k_im, (B, D), dtype=jnp.float32)
        s = jax.random.normal(k_s, (B, D), dtype=jnp.float32)
        matrix = (jax.random.uniform(k_m, (B, B)) > 0.95).astype(jnp.float32)
        matrix = jnp.maximum(matrix, jnp.eye(B, dtype=jnp.float32))
        return im, s, matrix

    # Case 1: single tile (grid (1, 1)).
    im, s, matrix = make_inputs(64, 32, jax.random.PRNGKey(0))
    ref = _reference_loss(im, s, matrix)
    out = contrastive_loss(im, s, matrix)
    jax.block_until_ready(out)
    assert jnp.allclose(out, ref, rtol=1e-5, atol=1e-6), (out, ref)

    # Case 2: multi row-block grid (2, 1) — per-row-block accumulator + parallel i axis.
    out2 = contrastive_loss(im, s, matrix, block_rows=32)
    jax.block_until_ready(out2)
    assert jnp.allclose(out2, ref, rtol=1e-5, atol=1e-6), (out2, ref)

    # Case 3: (4, 2) grid — exercises j-axis accumulation and the off-diagonal (no-eye) branch.
    im3, s3, matrix3 = make_inputs(256, 32, jax.random.PRNGKey(1))
    ref3 = _reference_loss(im3, s3, matrix3)
    out3 = contrastive_loss(im3, s3, matrix3, block_rows=64, block_cols=128)
    jax.block_until_ready(out3)
    assert jnp.allclose(out3, ref3, rtol=1e-5, atol=1e-6), (out3, ref3)

    # Case 4: bf16 MXU path (normally only auto-enabled for D >= 256); loose tolerance.
    out4 = contrastive_loss(im, s, matrix, use_bf16_matmul=True)
    jax.block_until_ready(out4)
    assert jnp.allclose(out4, ref, rtol=5e-2, atol=1e-3), (out4, ref)

    print("KERNEL_OK")
</pallas_src>

<mosaic_0001>
module attributes {stable_mosaic.version = 11 : i64} {
  func.func @kernel(%arg0: i32, %arg1: i32, %arg2: memref<64x32xf32, #tpu.memory_space<vmem>>, %arg3: memref<64x32xf32, #tpu.memory_space<vmem>>, %arg4: memref<64x1xf32, #tpu.memory_space<vmem>>, %arg5: memref<1x64xf32, #tpu.memory_space<vmem>>, %arg6: memref<64x64xi8, #tpu.memory_space<vmem>>, %arg7: memref<1x2x8x64xf32, #tpu.memory_space<vmem>>) attributes {dimension_semantics = [#tpu.dimension_semantics<parallel>, #tpu.dimension_semantics<arbitrary>], iteration_bounds = array<i64: 1, 1>, scalar_prefetch = 0 : i64, scratch_operands = 0 : i64, tpu.core_type = #tpu.core_type<tc>, window_params = [{transform_indices = @transform_0, window_bounds = array<i64: 64, 32>}, {transform_indices = @transform_1, window_bounds = array<i64: 64, 32>}, {transform_indices = @transform_2, window_bounds = array<i64: 64, 1>}, {transform_indices = @transform_3, window_bounds = array<i64: 1, 64>}, {transform_indices = @transform_4, window_bounds = array<i64: 64, 64>}, {transform_indices = @transform_5, window_bounds = array<i64: 1, 2, 8, 64>}]} {
    %c0_i32 = arith.constant 0 : i32
    %0 = arith.cmpi eq, %arg1, %c0_i32 : i32
    %1 = arith.extui %0 : i1 to i32
    %c0_i32_0 = arith.constant 0 : i32
    %2 = arith.cmpi ne, %1, %c0_i32_0 : i32
    scf.if %2 {
      %cst_29 = arith.constant 0.000000e+00 : f32
      %67 = vector.broadcast %cst_29 : f32 to vector<1x2x8x64xf32>
      %c0_30 = arith.constant 0 : index
      %c0_31 = arith.constant 0 : index
      %c0_32 = arith.constant 0 : index
      %c0_33 = arith.constant 0 : index
      %68 = vector.load %arg7[%c0_30, %c0_31, %c0_32, %c0_33] : memref<1x2x8x64xf32, #tpu.memory_space<vmem>>, vector<1x2x8x64xf32>
      tpu.vector_store %arg7[%c0_30, %c0_31, %c0_32, %c0_33], %67 {strides = array<i32>} : memref<1x2x8x64xf32, #tpu.memory_space<vmem>>, vector<1x2x8x64xf32>,
    } else {
    }
    %c0 = arith.constant 0 : index
    %c0_1 = arith.constant 0 : index
    %3 = vector.load %arg2[%c0, %c0_1] : memref<64x32xf32, #tpu.memory_space<vmem>>, vector<64x32xf32>
    %c0_2 = arith.constant 0 : index
    %c0_3 = arith.constant 0 : index
    %4 = vector.load %arg3[%c0_2, %c0_3] : memref<64x32xf32, #tpu.memory_space<vmem>>, vector<64x32xf32>
    %cst = arith.constant dense<0.000000e+00> : vector<64x64xf32>
    %5 = tpu.matmul %3, %4, %cst {dimension_numbers = #tpu.dot_dimension_numbers<[1], [1], [0], [0], [0, 0, 1, 0], [], []>} : vector<64x32xf32>, vector<64x32xf32>, vector<64x64xf32> -> vector<64x64xf32>
    %cst_4 = arith.constant 2.000000e+00 : f32
    %6 = vector.broadcast %cst_4 : f32 to vector<64x64xf32>
    %7 = arith.mulf %6, %5 : vector<64x64xf32>
    %cst_5 = arith.constant 2.000000e+00 : f32
    %8 = vector.broadcast %cst_5 : f32 to vector<64x64xf32>
    %9 = arith.subf %8, %7 : vector<64x64xf32>
    %c0_6 = arith.constant 0 : index
    %c0_7 = arith.constant 0 : index
    %10 = vector.load %arg4[%c0_6, %c0_7] : memref<64x1xf32, #tpu.memory_space<vmem>>, vector<64x1xf32>
    %c0_8 = arith.constant 0 : index
    %c0_9 = arith.constant 0 : index
    %11 = vector.load %arg5[%c0_8, %c0_9] : memref<1x64xf32, #tpu.memory_space<vmem>>, vector<1x64xf32>
    %c0_10 = arith.constant 0 : index
    %c0_11 = arith.constant 0 : index
    %12 = vector.load %arg6[%c0_10, %c0_11] : memref<64x64xi8, #tpu.memory_space<vmem>>, vector<64x64xi8>
    %c0_i8 = arith.constant 0 : i8
    %13 = vector.broadcast %c0_i8 : i8 to vector<64x64xi8>
    %14 = arith.cmpi ne, %12, %13 : vector<64x64xi8>
    %cst_12 = arith.constant 4.500000e-01 : f32
    %15 = vector.broadcast %cst_12 : f32 to vector<64x1xf32>
    %16 = arith.addf %15, %10 : vector<64x1xf32>
    %17 = vector.broadcast %16 : vector<64x1xf32> to vector<64x64xf32>
    %18 = arith.subf %17, %9 : vector<64x64xf32>
    %cst_13 = arith.constant 0.000000e+00 : f32
    %19 = vector.broadcast %cst_13 : f32 to vector<64x64xf32>
    %20 = arith.maximumf %18, %19 : vector<64x64xf32>
    %cst_14 = arith.constant 4.500000e-01 : f32
    %21 = vector.broadcast %cst_14 : f32 to vector<1x64xf32>
    %22 = arith.addf %21, %11 : vector<1x64xf32>
    %23 = vector.broadcast %22 : vector<1x64xf32> to vector<64x64xf32>
    %24 = arith.subf %23, %9 : vector<64x64xf32>
    %cst_15 = arith.constant 0.000000e+00 : f32
    %25 = vector.broadcast %cst_15 : f32 to vector<64x64xf32>
    %26 = arith.maximumf %24, %25 : vector<64x64xf32>
    %27 = vector.broadcast %10 : vector<64x1xf32> to vector<64x64xf32>
    %28 = arith.cmpf oeq, %9, %27 : vector<64x64xf32>
    %29 = arith.ori %28, %14 : vector<64x64xi1>
    %c0_16 = arith.constant 0 : index
    %c1 = arith.constant 1 : index
    %c0_17 = arith.constant 0 : index
    %c0_18 = arith.constant 0 : index
    %30 = vector.load %arg7[%c0_16, %c1, %c0_17, %c0_18] : memref<1x2x8x64xf32, #tpu.memory_space<vmem>>, vector<1x1x8x64xf32>
    %31 = vector.shape_cast %30 : vector<1x1x8x64xf32> to vector<8x64xf32>
    %32 = arith.extui %14 : vector<64x64xi1> to vector<64x64xi32>
    %33 = arith.sitofp %32 : vector<64x64xi32> to vector<64x64xf32>
    %34 = vector.extract_strided_slice %33 {offsets = [0, 0], sizes = [8, 64], strides = [1, 1]} : vector<64x64xf32> to vector<8x64xf32>
    %35 = vector.extract_strided_slice %33 {offsets = [8, 0], sizes = [8, 64], strides = [1, 1]} : vector<64x64xf32> to vector<8x64xf32>
    %36 = arith.addf %34, %35 : vector<8x64xf32>
    %37 = vector.extract_strided_slice %33 {offsets = [16, 0], sizes = [8, 64], strides = [1, 1]} : vector<64x64xf32> to vector<8x64xf32>
    %38 = arith.addf %36, %37 : vector<8x64xf32>
    %39 = vector.extract_strided_slice %33 {offsets = [24, 0], sizes = [8, 64], strides = [1, 1]} : vector<64x64xf32> to vector<8x64xf32>
    %40 = arith.addf %38, %39 : vector<8x64xf32>
    %41 = vector.extract_strided_slice %33 {offsets = [32, 0], sizes = [8, 64], strides = [1, 1]} : vector<64x64xf32> to vector<8x64xf32>
    %42 = arith.addf %40, %41 : vector<8x64xf32>
    %43 = vector.extract_strided_slice %33 {offsets = [40, 0], sizes = [8, 64], strides = [1, 1]} : vector<64x64xf32> to vector<8x64xf32>
    %44 = arith.addf %42, %43 : vector<8x64xf32>
    %45 = vector.extract_strided_slice %33 {offsets = [48, 0], sizes = [8, 64], strides = [1, 1]} : vector<64x64xf32> to vector<8x64xf32>
    %46 = arith.addf %44, %45 : vector<8x64xf32>
    %47 = vector.extract_strided_slice %33 {offsets = [56, 0], sizes = [8, 64], strides = [1, 1]} : vector<64x64xf32> to vector<8x64xf32>
    %48 = arith.addf %46, %47 : vector<8x64xf32>
    %49 = arith.addf %31, %48 : vector<8x64xf32>
    %c0_19 = arith.constant 0 : index
    %c1_20 = arith.constant 1 : index
    %c0_21 = arith.constant 0 : index
    %c0_22 = arith.constant 0 : index
    %50 = vector.load %arg7[%c0_19, %c1_20, %c0_21, %c0_22] : memref<1x2x8x64xf32, #tpu.memory_space<vmem>>, vector<1x1x8x64xf32>
    %51 = vector.shape_cast %50 : vector<1x1x8x64xf32> to vector<8x64xf32>
    %52 = vector.shape_cast %49 : vector<8x64xf32> to vector<1x1x8x64xf32>
    tpu.vector_store %arg7[%c0_19, %c1_20, %c0_21, %c0_22], %52 {strides = array<i32>} : memref<1x2x8x64xf32, #tpu.memory_space<vmem>>, vector<1x1x8x64xf32>,
    %c64_i32 = arith.constant 64 : i32
    %53 = arith.muli %arg0, %c64_i32 : i32
    %c1_i32 = arith.constant 1 : i32
    %54 = arith.addi %arg1, %c1_i32 : i32
    %c64_i32_23 = arith.constant 64 : i32
    %55 = arith.muli %54, %c64_i32_23 : i32
    %56 = arith.cmpi slt, %53, %55 : i32
    %c64_i32_24 = arith.constant 64 : i32
    %57 = arith.muli %arg1, %c64_i32_24 : i32
    %c1_i32_25 = arith.constant 1 : i32
    %58 = arith.addi %arg0, %c1_i32_25 : i32
    %c64_i32_26 = arith.constant 64 : i32
    %59 = arith.muli %58, %c64_i32_26 : i32
    %60 = arith.cmpi slt, %57, %59 : i32
    %61 = arith.andi %56, %60 : i1
    %62 = arith.extui %61 : i1 to i32
    %c0_i32_27 = arith.constant 0 : i32
    %63 = arith.cmpi ne, %62, %c0_i32_27 : i32
    scf.if %63 {
      %67 = tpu.iota {dimensions = array<i32: 0>} : vector<64x64xi32>
      %68 = tpu.iota {dimensions = array<i32: 1>} : vector<64x64xi32>
      %69 = arith.subi %67, %68 : vector<64x64xi32>
      %c64_i32_29 = arith.constant 64 : i32
      %70 = arith.muli %arg1, %c64_i32_29 : i32
      %c64_i32_30 = arith.constant 64 : i32
      %71 = arith.muli %arg0, %c64_i32_30 : i32
      %72 = arith.subi %70, %71 : i32
      %73 = vector.broadcast %72 : i32 to vector<64x64xi32>
      %74 = arith.cmpi eq, %69, %73 : vector<64x64xi32>
      %75 = arith.ori %29, %74 : vector<64x64xi1>
      %76 = arith.ori %14, %74 : vector<64x64xi1>
      %cst_31 = arith.constant 0.000000e+00 : f32
      %77 = vector.broadcast %cst_31 : f32 to vector<64x64xf32>
      %78 = arith.select %75, %77, %20 : vector<64x64xi1>, vector<64x64xf32>
      %cst_32 = arith.constant 0.000000e+00 : f32
      %79 = vector.broadcast %cst_32 : f32 to vector<64x64xf32>
      %80 = arith.select %76, %79, %26 : vector<64x64xi1>, vector<64x64xf32>
      %81 = arith.addf %78, %80 : vector<64x64xf32>
      %c0_33 = arith.constant 0 : index
      %c0_34 = arith.constant 0 : index
      %c0_35 = arith.constant 0 : index
      %c0_36 = arith.constant 0 : index
      %82 = vector.load %arg7[%c0_33, %c0_34, %c0_35, %c0_36] : memref<1x2x8x64xf32, #tpu.memory_space<vmem>>, vector<1x1x8x64xf32>
      %83 = vector.shape_cast %82 : vector<1x1x8x64xf32> to vector<8x64xf32>
      %84 = vector.extract_strided_slice %81 {offsets = [0, 0], sizes = [8, 64], strides = [1, 1]} : vector<64x64xf32> to vector<8x64xf32>
      %85 = vector.extract_strided_slice %81 {offsets = [8, 0], sizes = [8, 64], strides = [1, 1]} : vector<64x64xf32> to vector<8x64xf32>
      %86 = arith.addf %84, %85 : vector<8x64xf32>
      %87 = vector.extract_strided_slice %81 {offsets = [16, 0], sizes = [8, 64], strides = [1, 1]} : vector<64x64xf32> to vector<8x64xf32>
      %88 = arith.addf %86, %87 : vector<8x64xf32>
      %89 = vector.extract_strided_slice %81 {offsets = [24, 0], sizes = [8, 64], strides = [1, 1]} : vector<64x64xf32> to vector<8x64xf32>
      %90 = arith.addf %88, %89 : vector<8x64xf32>
      %91 = vector.extract_strided_slice %81 {offsets = [32, 0], sizes = [8, 64], strides = [1, 1]} : vector<64x64xf32> to vector<8x64xf32>
      %92 = arith.addf %90, %91 : vector<8x64xf32>
      %93 = vector.extract_strided_slice %81 {offsets = [40, 0], sizes = [8, 64], strides = [1, 1]} : vector<64x64xf32> to vector<8x64xf32>
      %94 = arith.addf %92, %93 : vector<8x64xf32>
      %95 = vector.extract_strided_slice %81 {offsets = [48, 0], sizes = [8, 64], strides = [1, 1]} : vector<64x64xf32> to vector<8x64xf32>
      %96 = arith.addf %94, %95 : vector<8x64xf32>
      %97 = vector.extract_strided_slice %81 {offsets = [56, 0], sizes = [8, 64], strides = [1, 1]} : vector<64x64xf32> to vector<8x64xf32>
      %98 = arith.addf %96, %97 : vector<8x64xf32>
      %99 = arith.addf %83, %98 : vector<8x64xf32>
      %c0_37 = arith.constant 0 : index
      %c0_38 = arith.constant 0 : index
      %c0_39 = arith.constant 0 : index
      %c0_40 = arith.constant 0 : index
      %100 = vector.load %arg7[%c0_37, %c0_38, %c0_39, %c0_40] : memref<1x2x8x64xf32, #tpu.memory_space<vmem>>, vector<1x1x8x64xf32>
      %101 = vector.shape_cast %100 : vector<1x1x8x64xf32> to vector<8x64xf32>
      %102 = vector.shape_cast %99 : vector<8x64xf32> to vector<1x1x8x64xf32>
      tpu.vector_store %arg7[%c0_37, %c0_38, %c0_39, %c0_40], %102 {strides = array<i32>} : memref<1x2x8x64xf32, #tpu.memory_space<vmem>>, vector<1x1x8x64xf32>,
    } else {
    }
    %true = arith.constant true
    %64 = arith.xori %61, %true : i1
    %65 = arith.extui %64 : i1 to i32
    %c0_i32_28 = arith.constant 0 : i32
    %66 = arith.cmpi ne, %65, %c0_i32_28 : i32
    scf.if %66 {
      %cst_29 = arith.constant 0.000000e+00 : f32
      %67 = vector.broadcast %cst_29 : f32 to vector<64x64xf32>
      %68 = arith.select %29, %67, %20 : vector<64x64xi1>, vector<64x64xf32>
      %cst_30 = arith.constant 0.000000e+00 : f32
      %69 = vector.broadcast %cst_30 : f32 to vector<64x64xf32>
      %70 = arith.select %14, %69, %26 : vector<64x64xi1>, vector<64x64xf32>
      %71 = arith.addf %68, %70 : vector<64x64xf32>
      %c0_31 = arith.constant 0 : index
      %c0_32 = arith.constant 0 : index
      %c0_33 = arith.constant 0 : index
      %c0_34 = arith.constant 0 : index
      %72 = vector.load %arg7[%c0_31, %c0_32, %c0_33, %c0_34] : memref<1x2x8x64xf32, #tpu.memory_space<vmem>>, vector<1x1x8x64xf32>
      %73 = vector.shape_cast %72 : vector<1x1x8x64xf32> to vector<8x64xf32>
      %74 = vector.extract_strided_slice %71 {offsets = [0, 0], sizes = [8, 64], strides = [1, 1]} : vector<64x64xf32> to vector<8x64xf32>
      %75 = vector.extract_strided_slice %71 {offsets = [8, 0], sizes = [8, 64], strides = [1, 1]} : vector<64x64xf32> to vector<8x64xf32>
      %76 = arith.addf %74, %75 : vector<8x64xf32>
      %77 = vector.extract_strided_slice %71 {offsets = [16, 0], sizes = [8, 64], strides = [1, 1]} : vector<64x64xf32> to vector<8x64xf32>
      %78 = arith.addf %76, %77 : vector<8x64xf32>
      %79 = vector.extract_strided_slice %71 {offsets = [24, 0], sizes = [8, 64], strides = [1, 1]} : vector<64x64xf32> to vector<8x64xf32>
      %80 = arith.addf %78, %79 : vector<8x64xf32>
      %81 = vector.extract_strided_slice %71 {offsets = [32, 0], sizes = [8, 64], strides = [1, 1]} : vector<64x64xf32> to vector<8x64xf32>
      %82 = arith.addf %80, %81 : vector<8x64xf32>
      %83 = vector.extract_strided_slice %71 {offsets = [40, 0], sizes = [8, 64], strides = [1, 1]} : vector<64x64xf32> to vector<8x64xf32>
      %84 = arith.addf %82, %83 : vector<8x64xf32>
      %85 = vector.extract_strided_slice %71 {offsets = [48, 0], sizes = [8, 64], strides = [1, 1]} : vector<64x64xf32> to vector<8x64xf32>
      %86 = arith.addf %84, %85 : vector<8x64xf32>
      %87 = vector.extract_strided_slice %71 {offsets = [56, 0], sizes = [8, 64], strides = [1, 1]} : vector<64x64xf32> to vector<8x64xf32>
      %88 = arith.addf %86, %87 : vector<8x64xf32>
      %89 = arith.addf %73, %88 : vector<8x64xf32>
      %c0_35 = arith.constant 0 : index
      %c0_36 = arith.constant 0 : index
      %c0_37 = arith.constant 0 : index
      %c0_38 = arith.constant 0 : index
      %90 = vector.load %arg7[%c0_35, %c0_36, %c0_37, %c0_38] : memref<1x2x8x64xf32, #tpu.memory_space<vmem>>, vector<1x1x8x64xf32>
      %91 = vector.shape_cast %90 : vector<1x1x8x64xf32> to vector<8x64xf32>
      %92 = vector.shape_cast %89 : vector<8x64xf32> to vector<1x1x8x64xf32>
      tpu.vector_store %arg7[%c0_35, %c0_36, %c0_37, %c0_38], %92 {strides = array<i32>} : memref<1x2x8x64xf32, #tpu.memory_space<vmem>>, vector<1x1x8x64xf32>,
    } else {
    }
    return
  }
  func.func @transform_0(%arg0: i32, %arg1: i32) -> (i32, i32) {
    %c0_i32 = arith.constant 0 : i32
    %c0_i32_0 = arith.constant 0 : i32
    return %arg0, %c0_i32 : i32, i32
  }
  func.func @transform_1(%arg0: i32, %arg1: i32) -> (i32, i32) {
    %c0_i32 = arith.constant 0 : i32
    %c0_i32_0 = arith.constant 0 : i32
    return %arg1, %c0_i32 : i32, i32
  }
  func.func @transform_2(%arg0: i32, %arg1: i32) -> (i32, i32) {
    %c0_i32 = arith.constant 0 : i32
    %c0_i32_0 = arith.constant 0 : i32
    return %arg0, %c0_i32 : i32, i32
  }
  func.func @transform_3(%arg0: i32, %arg1: i32) -> (i32, i32) {
    %c0_i32 = arith.constant 0 : i32
    %c0_i32_0 = arith.constant 0 : i32
    return %c0_i32, %arg1 : i32, i32
  }
  func.func @transform_4(%arg0: i32, %arg1: i32) -> (i32, i32) {
    %c0_i32 = arith.constant 0 : i32
    return %arg0, %arg1 : i32, i32
  }
  func.func @transform_5(%arg0: i32, %arg1: i32) -> (i32, i32, i32, i32) {
    %c0_i32 = arith.constant 0 : i32
    %c0_i32_0 = arith.constant 0 : i32
    %c0_i32_1 = arith.constant 0 : i32
    %c0_i32_2 = arith.constant 0 : i32
    return %arg0, %c0_i32, %c0_i32_0, %c0_i32_1 : i32, i32, i32, i32
  }
}

</mosaic_0001>

<llo_original>
// kernel: tpu_custom_call.1
$region0: #{tpu_custom_call.1}
  #allocation0 [shape = 'u32[]', space=smem, size = 0x4, offset = 0x4, fixed_abs, tag = 'smem constant byte address 0x4 - core index']
  #allocation1 [shape = 'u32[72,128]{1,0:T(1,128)}', space=vmem, size = 0x9000, scoped, tag = 'internal scratch']
  %s0 = inlined_call_operand.vmem [shape: f32[64,32], index: 0, kind: input, shape index: {}]
  %s1 = inlined_call_operand.vmem [shape: f32[64,32], index: 1, kind: input, shape index: {}]
  %s2 = inlined_call_operand.vmem [shape: f32[64,1], index: 2, kind: input, shape index: {}]
  %s3 = inlined_call_operand.vmem [shape: f32[1,64], index: 3, kind: input, shape index: {}]
  %s4 = inlined_call_operand.vmem [shape: s8[64,64], index: 4, kind: input, shape index: {}]
  %s5 = inlined_call_operand.hbm [shape: f32[1,2,8,64], index: 5, kind: output, shape index: {}]
  %s6 = sld [smem:[#allocation0]]
  $region42: #{tpu_custom_call.1} parent=0
    _
  %s8 = ssub.s32 1, %s6
  %s9 = scalar_select 0, %s8, %s6
  $region1: #{tpu_custom_call.1} parent=0
    #allocation2 [shape = 'u8[8192]{0}', space=vmem, size = 0x2000, scoped, tag = 'output window, operand 0, single buffered']
    #allocation3 [shape = 's32[1]{0}', space=sflag, size = 0x4, scoped, tag = 'scoped memory for tpu_custom_call.1']
    %10 = vsyncpa [#allocation3], 0
    // Predicated region
    $region2: #{tpu_custom_call.1} parent=1 // pred_check
      _
    $region3: #{tpu_custom_call.1} parent=1 // pred_check_branch
      %12 = sbr.rel (0) target = $region5
    $region4: #{tpu_custom_call.1} parent=1 // pred_region
      _
    $region5: #{tpu_custom_call.1} parent=1 // pred_fallthru
      _
    // Predicated region
    $region6: #{tpu_custom_call.1} parent=1 // pred_check
      _
    $region7: #{tpu_custom_call.1} parent=1 // pred_check_branch
      %14 = sbr.rel (0) target = $region9
    $region8: #{tpu_custom_call.1} parent=1 // pred_region
      _
    $region9: #{tpu_custom_call.1} parent=1 // pred_fallthru
      _
    // Predicated region
    $region10: #{tpu_custom_call.1} parent=1 // pred_check
      _
    $region11: #{tpu_custom_call.1} parent=1 // pred_check_branch
      %16 = sbr.rel (0) target = $region13
    $region12: #{tpu_custom_call.1} parent=1 // pred_region
      _
    $region13: #{tpu_custom_call.1} parent=1 // pred_fallthru
      _
    // Predicated region
    $region14: #{tpu_custom_call.1} parent=1 // pred_check
      _
    $region15: #{tpu_custom_call.1} parent=1 // pred_check_branch
      %18 = sbr.rel (0) target = $region17
    $region16: #{tpu_custom_call.1} parent=1 // pred_region
      _
    $region17: #{tpu_custom_call.1} parent=1 // pred_fallthru
      _
    // Predicated region
    $region18: #{tpu_custom_call.1} parent=1 // pred_check
      _
    $region19: #{tpu_custom_call.1} parent=1 // pred_check_branch
      %20 = sbr.rel (0) target = $region21
    $region20: #{tpu_custom_call.1} parent=1 // pred_region
      _
    $region21: #{tpu_custom_call.1} parent=1 // pred_fallthru
      _
    %p23 = scmp.eq.s32.totalorder 0, 0
    // Predicated region
    $region22: #{tpu_custom_call.1} parent=1 // pred_check
      %p24 = pneg %p23
    $region23: #{tpu_custom_call.1} parent=1 // pred_check_branch
      %26 = sbr.rel (%p24) target = $region25
    $region24: #{tpu_custom_call.1} parent=1 // pred_region
      %vm27 = vcmask 523264
      %28 = vst.msk [vmem:[#allocation2] sm:$0xff] %vm27, 0.0
      %29 = vst.msk [vmem:[#allocation2 + $0x8] sm:$0xff] %vm27, 0.0
    $region25: #{tpu_custom_call.1} parent=1 // pred_fallthru
      _
    %v30 = vld [vmem:[%s0] sm:$0xff]
    %v31 = vld [vmem:[%s0 + $0x8] sm:$0xff]
    %v32 = vld [vmem:[%s0 + $0x10] sm:$0xff]
    %v33 = vld [vmem:[%s0 + $0x18] sm:$0xff]
    %v34 = vld [vmem:[%s0 + $0x20] sm:$0xff]
    %v35 = vld [vmem:[%s0 + $0x28] sm:$0xff]
    %v36 = vld [vmem:[%s0 + $0x30] sm:$0xff]
    %v37 = vld [vmem:[%s0 + $0x38] sm:$0xff]
    %v38 = vld [vmem:[%s1] sm:$0xff]
    %v39 = vld [vmem:[%s1 + $0x8] sm:$0xff]
    %v40 = vld [vmem:[%s1 + $0x10] sm:$0xff]
    %v41 = vld [vmem:[%s1 + $0x18] sm:$0xff]
    %v42 = vld [vmem:[%s1 + $0x20] sm:$0xff]
    %v43 = vld [vmem:[%s1 + $0x28] sm:$0xff]
    %v44 = vld [vmem:[%s1 + $0x30] sm:$0xff]
    %v45 = vld [vmem:[%s1 + $0x38] sm:$0xff]
    %vm46 = vcmask 261120
    %v48 = vsel %vm46, %v30, 0
    %v51 = vsel %vm46, %v31, 0
    %v54 = vsel %vm46, %v32, 0
    %v57 = vsel %vm46, %v33, 0
    %v60 = vsel %vm46, %v34, 0
    %v63 = vsel %vm46, %v35, 0
    %v66 = vsel %vm46, %v36, 0
    %v69 = vsel %vm46, %v37, 0
    %v72 = vsel %vm46, %v38, 0
    %v75 = vsel %vm46, %v39, 0
    %v78 = vsel %vm46, %v40, 0
    %v81 = vsel %vm46, %v41, 0
    %v84 = vsel %vm46, %v42, 0
    %v87 = vsel %vm46, %v43, 0
    %v90 = vsel %vm46, %v44, 0
    %v93 = vsel %vm46, %v45, 0
    %95 = vmatpush.xpose.msra.mxu0 0.0
    %96 = vmatpush.xpose.msra.mxu0 0.0
    %97 = vmatpush.xpose.msra.mxu0 0.0
    %98 = vmatpush.xpose.msra.mxu0 0.0
    %99 = vmatpush.xpose.msra.mxu0 0.0
    %100 = vmatpush.xpose.msra.mxu0 0.0
    %101 = vmatpush.xpose.msra.mxu0 0.0
    %102 = vmatpush.xpose.msra.mxu0 0.0
    %103 = vmatpush.xpose.msra.mxu0 %v93
    %104 = vmatpush.xpose.msra.mxu0 %v90
    %105 = vmatpush.xpose.msra.mxu0 %v87
    %106 = vmatpush.xpose.msra.mxu0 %v84
    %107 = vmatpush.xpose.msra.mxu0 %v81
    %108 = vmatpush.xpose.msra.mxu0 %v78
    %109 = vmatpush.xpose.msra.mxu0 %v75
    %110 = vmatpush.xpose.msra.mxu0 %v72
    %111 = vmatmul.f32.gmra.mxu0 %v48
    %v112 = vpop.f32.mrf.mxu0
    %v113 = vadd.f32 0.0, %v112
    %114 = vmatmul.f32.gmra.mxu0 %v51
    %v115 = vpop.f32.mrf.mxu0
    %v116 = vadd.f32 0.0, %v115
    %117 = vmatmul.f32.gmra.mxu0 %v54
    %v118 = vpop.f32.mrf.mxu0
    %v119 = vadd.f32 0.0, %v118
    %120 = vmatmul.f32.gmra.mxu0 %v57
    %v121 = vpop.f32.mrf.mxu0
    %v122 = vadd.f32 0.0, %v121
    %123 = vmatmul.f32.gmra.mxu0 %v60
    %v124 = vpop.f32.mrf.mxu0
    %v125 = vadd.f32 0.0, %v124
    %126 = vmatmul.f32.gmra.mxu0 %v63
    %v127 = vpop.f32.mrf.mxu0
    %v128 = vadd.f32 0.0, %v127
    %129 = vmatmul.f32.gmra.mxu0 %v66
    %v130 = vpop.f32.mrf.mxu0
    %v131 = vadd.f32 0.0, %v130
    %132 = vmatmul.f32.gmra.mxu0 %v69
    %v133 = vpop.f32.mrf.mxu0
    %v134 = vadd.f32 0.0, %v133
    %135 = vdwg.mxu0
    %v136 = vmul.f32 %v113, 2.0
    %v137 = vmul.f32 %v116, 2.0
    %v138 = vmul.f32 %v119, 2.0
    %v139 = vmul.f32 %v122, 2.0
    %v140 = vmul.f32 %v125, 2.0
    %v141 = vmul.f32 %v128, 2.0
    %v142 = vmul.f32 %v131, 2.0
    %v143 = vmul.f32 %v134, 2.0
    %v144 = vsub.f32 2.0, %v136
    %v145 = vsub.f32 2.0, %v137
    %v146 = vsub.f32 2.0, %v138
    %v147 = vsub.f32 2.0, %v139
    %v148 = vsub.f32 2.0, %v140
    %v149 = vsub.f32 2.0, %v141
    %v150 = vsub.f32 2.0, %v142
    %v151 = vsub.f32 2.0, %v143
    %v152 = vld [vmem:[%s2] sm:$0xff]
    %v153 = vld [vmem:[%s2 + $0x8] sm:$0xff]
    %v154 = vld [vmem:[%s2 + $0x10] sm:$0xff]
    %v155 = vld [vmem:[%s2 + $0x18] sm:$0xff]
    %v156 = vld [vmem:[%s2 + $0x20] sm:$0xff]
    %v157 = vld [vmem:[%s2 + $0x28] sm:$0xff]
    %v158 = vld [vmem:[%s2 + $0x30] sm:$0xff]
    %v159 = vld [vmem:[%s2 + $0x38] sm:$0xff]
    %v160 = vld [vmem:[%s3] sm:$0x1]
    %v161 = vld [vmem:[%s4] sm:$0xff]
    %v162 = vld [vmem:[%s4 + $0x8] sm:$0xff]
    %vm163 = vnez %v161
    %vm164 = vnez %v162
    %v165 = vadd.f32 %v152, 0.45
    %v166 = vadd.f32 %v153, 0.45
    %v167 = vadd.f32 %v154, 0.45
    %v168 = vadd.f32 %v155, 0.45
    %v169 = vadd.f32 %v156, 0.45
    %v170 = vadd.f32 %v157, 0.45
    %v171 = vadd.f32 %v158, 0.45
    %v172 = vadd.f32 %v159, 0.45
    %174 = vset.pattern.permute.xlu0 0
    %175 = vperm.xlu0 %174, %v165
    %v176 = vpop.permute.xlu0 %175
    %179 = vset.pattern.permute.xlu0 0
    %180 = vperm.xlu0 %179, %v166
    %v181 = vpop.permute.xlu0 %180
    %184 = vset.pattern.permute.xlu0 0
    %185 = vperm.xlu0 %184, %v167
    %v186 = vpop.permute.xlu0 %185
    %189 = vset.pattern.permute.xlu0 0
    %190 = vperm.xlu0 %189, %v168
    %v191 = vpop.permute.xlu0 %190
    %194 = vset.pattern.permute.xlu0 0
    %195 = vperm.xlu0 %194, %v169
    %v196 = vpop.permute.xlu0 %195
    %199 = vset.pattern.permute.xlu0 0
    %200 = vperm.xlu0 %199, %v170
    %v201 = vpop.permute.xlu0 %200
    %204 = vset.pattern.permute.xlu0 0
    %205 = vperm.xlu0 %204, %v171
    %v206 = vpop.permute.xlu0 %205
    %209 = vset.pattern.permute.xlu0 0
    %210 = vperm.xlu0 %209, %v172
    %v211 = vpop.permute.xlu0 %210
    %v213 = vsub.f32 %v176, %v144
    %v214 = vsub.f32 %v181, %v145
    %v215 = vsub.f32 %v186, %v146
    %v216 = vsub.f32 %v191, %v147
    %v217 = vsub.f32 %v196, %v148
    %v218 = vsub.f32 %v201, %v149
    %v219 = vsub.f32 %v206, %v150
    %v220 = vsub.f32 %v211, %v151
    %v221 = vmax.f32 %v213, 0.0
    %v222 = vmax.f32 %v214, 0.0
    %v223 = vmax.f32 %v215, 0.0
    %v224 = vmax.f32 %v216, 0.0
    %v225 = vmax.f32 %v217, 0.0
    %v226 = vmax.f32 %v218, 0.0
    %v227 = vmax.f32 %v219, 0.0
    %v228 = vmax.f32 %v220, 0.0
    %v229 = vadd.f32 %v160, 0.45
    %v231 = vperm.slane %v229, 0
    %v233 = vsub.f32 %v231, %v144
    %v234 = vsub.f32 %v231, %v145
    %v235 = vsub.f32 %v231, %v146
    %v236 = vsub.f32 %v231, %v147
    %v237 = vsub.f32 %v231, %v148
    %v238 = vsub.f32 %v231, %v149
    %v239 = vsub.f32 %v231, %v150
    %v240 = vsub.f32 %v231, %v151
    %v241 = vmax.f32 %v233, 0.0
    %v242 = vmax.f32 %v234, 0.0
    %v243 = vmax.f32 %v235, 0.0
    %v244 = vmax.f32 %v236, 0.0
    %v245 = vmax.f32 %v237, 0.0
    %v246 = vmax.f32 %v238, 0.0
    %v247 = vmax.f32 %v239, 0.0
    %v248 = vmax.f32 %v240, 0.0
    %250 = vset.pattern.permute.xlu0 0
    %251 = vperm.xlu0 %250, %v152
    %v252 = vpop.permute.xlu0 %251
    %255 = vset.pattern.permute.xlu0 0
    %256 = vperm.xlu0 %255, %v153
    %v257 = vpop.permute.xlu0 %256
    %260 = vset.pattern.permute.xlu0 0
    %261 = vperm.xlu0 %260, %v154
    %v262 = vpop.permute.xlu0 %261
    %265 = vset.pattern.permute.xlu0 0
    %266 = vperm.xlu0 %265, %v155
    %v267 = vpop.permute.xlu0 %266
    %270 = vset.pattern.permute.xlu0 0
    %271 = vperm.xlu0 %270, %v156
    %v272 = vpop.permute.xlu0 %271
    %275 = vset.pattern.permute.xlu0 0
    %276 = vperm.xlu0 %275, %v157
    %v277 = vpop.permute.xlu0 %276
    %280 = vset.pattern.permute.xlu0 0
    %281 = vperm.xlu0 %280, %v158
    %v282 = vpop.permute.xlu0 %281
    %285 = vset.pattern.permute.xlu0 0
    %286 = vperm.xlu0 %285, %v159
    %v287 = vpop.permute.xlu0 %286
    %vm289 = vcmp.eq.f32.partialorder %v144, %v252
    %vm290 = vcmp.eq.f32.partialorder %v145, %v257
    %vm291 = vcmp.eq.f32.partialorder %v146, %v262
    %vm292 = vcmp.eq.f32.partialorder %v147, %v267
    %vm293 = vcmp.eq.f32.partialorder %v148, %v272
    %vm294 = vcmp.eq.f32.partialorder %v149, %v277
    %vm295 = vcmp.eq.f32.partialorder %v150, %v282
    %vm296 = vcmp.eq.f32.partialorder %v151, %v287
    %v297 = vsel %vm163, 16843009, 0
    %v298 = vsel %vm164, 16843009, 0
    %v299 = vunpack.c.0.s8 %v297
    %v300 = vunpack.c.1.s8 %v297
    %v301 = vunpack.c.2.s8 %v297
    %v302 = vunpack.c.3.s8 %v297
    %v303 = vunpack.c.0.s8 %v298
    %v304 = vunpack.c.1.s8 %v298
    %v305 = vunpack.c.2.s8 %v298
    %v306 = vunpack.c.3.s8 %v298
    %v307 = vpack.c.b16 %v299, %v299
    %v308 = vpack.c.b8 %v307, %v307
    %v309 = vpack.c.b16 %v300, %v300
    %v310 = vpack.c.b8 %v309, %v309
    %v311 = vpack.c.b16 %v301, %v301
    %v312 = vpack.c.b8 %v311, %v311
    %v313 = vpack.c.b16 %v302, %v302
    %v314 = vpack.c.b8 %v313, %v313
    %v315 = vpack.c.b16 %v303, %v303
    %v316 = vpack.c.b8 %v315, %v315
    %v317 = vpack.c.b16 %v304, %v304
    %v318 = vpack.c.b8 %v317, %v317
    %v319 = vpack.c.b16 %v305, %v305
    %v320 = vpack.c.b8 %v319, %v319
    %v321 = vpack.c.b16 %v306, %v306
    %v322 = vpack.c.b8 %v321, %v321
    %vm323 = vnez %v308
    %vm324 = vnez %v310
    %vm325 = vnez %v312
    %vm326 = vnez %v314
    %vm327 = vnez %v316
    %vm328 = vnez %v318
    %vm329 = vnez %v320
    %vm330 = vnez %v322
    %v331 = vsel %vm323, 16843009, 0
    %v332 = vsel %vm324, 16843009, 0
    %v333 = vsel %vm325, 16843009, 0
    %v334 = vsel %vm326, 16843009, 0
    %v335 = vsel %vm327, 16843009, 0
    %v336 = vsel %vm328, 16843009, 0
    %v337 = vsel %vm329, 16843009, 0
    %v338 = vsel %vm330, 16843009, 0
    %v339 = vunpack.c.0.s8 %v331
    %v340 = vunpack.c.0.s8 %v332
    %v341 = vunpack.c.0.s8 %v333
    %v342 = vunpack.c.0.s8 %v334
    %v343 = vunpack.c.0.s8 %v335
    %v344 = vunpack.c.0.s8 %v336
    %v345 = vunpack.c.0.s8 %v337
    %v346 = vunpack.c.0.s8 %v338
    %vm347 = vcmp.ne.s32.totalorder %v339, 0
    %vm348 = vcmp.ne.s32.totalorder %v340, 0
    %vm349 = vcmp.ne.s32.totalorder %v341, 0
    %vm350 = vcmp.ne.s32.totalorder %v342, 0
    %vm351 = vcmp.ne.s32.totalorder %v343, 0
    %vm352 = vcmp.ne.s32.totalorder %v344, 0
    %vm353 = vcmp.ne.s32.totalorder %v345, 0
    %vm354 = vcmp.ne.s32.totalorder %v346, 0
    %vm355 = vmor %vm289, %vm347
    %vm356 = vmor %vm290, %vm348
    %vm357 = vmor %vm291, %vm349
    %vm358 = vmor %vm292, %vm350
    %vm359 = vmor %vm293, %vm351
    %vm360 = vmor %vm294, %vm352
    %vm361 = vmor %vm295, %vm353
    %vm362 = vmor %vm296, %vm354
    %s363 = scalar_lea.vmem [#allocation2], 8
    %v364 = vld [vmem:[%s363] sm:$0xff]
    %v365 = vsel %vm347, 1, 0
    %v366 = vsel %vm348, 1, 0
    %v367 = vsel %vm349, 1, 0
    %v368 = vsel %vm350, 1, 0
    %v369 = vsel %vm351, 1, 0
    %v370 = vsel %vm352, 1, 0
    %v371 = vsel %vm353, 1, 0
    %v372 = vsel %vm354, 1, 0
    %v373 = vcvt.s32.f32 %v365
    %v374 = vcvt.s32.f32 %v366
    %v375 = vcvt.s32.f32 %v367
    %v376 = vcvt.s32.f32 %v368
    %v377 = vcvt.s32.f32 %v369
    %v378 = vcvt.s32.f32 %v370
    %v379 = vcvt.s32.f32 %v371
    %v380 = vcvt.s32.f32 %v372
    %v381 = vadd.f32 %v373, %v374
    %v382 = vadd.f32 %v381, %v375
    %v383 = vadd.f32 %v382, %v376
    %v384 = vadd.f32 %v383, %v377
    %v385 = vadd.f32 %v384, %v378
    %v386 = vadd.f32 %v385, %v379
    %v387 = vadd.f32 %v386, %v380
    %v388 = vadd.f32 %v364, %v387
    %vm389 = vcmask 523264
    %390 = vst.msk [vmem:[%s363] sm:$0xff] %vm389, %v388
    %s391 = smul.u32 0, 64
    %s392 = sadd.s32 0, 1
    %s393 = smul.u32 %s392, 64
    %p394 = scmp.lt.s32.totalorder %s391, %s393
    %s395 = smul.u32 0, 64
    %s396 = sadd.s32 0, 1
    %s397 = smul.u32 %s396, 64
    %p398 = scmp.lt.s32.totalorder %s395, %s397
    %p399 = pnand %p394, %p398
    %p400 = pneg %p399
    // Predicated region
    $region26: #{tpu_custom_call.1} parent=1 // pred_check
      _
    $region27: #{tpu_custom_call.1} parent=1 // pred_check_branch
      %402 = sbr.rel (%p399) target = $region29
    $region28: #{tpu_custom_call.1} parent=1 // pred_region
      %v403 = vlaneseq
      %v404 = vshrl.u32 %v403, 7
      %v405 = vadd.s32 %v404, 8
      %v406 = vadd.s32 %v404, 16
      %v407 = vadd.s32 %v404, 24
      %v408 = vadd.s32 %v404, 32
      %v409 = vadd.s32 %v404, 40
      %v410 = vadd.s32 %v404, 48
      %v411 = vadd.s32 %v404, 56
      %v412 = vlaneseq
      %v413 = vand.u32 %v412, 127
      %v414 = vsub.s32 %v404, %v413
      %v415 = vsub.s32 %v405, %v413
      %v416 = vsub.s32 %v406, %v413
      %v417 = vsub.s32 %v407, %v413
      %v418 = vsub.s32 %v408, %v413
      %v419 = vsub.s32 %v409, %v413
      %v420 = vsub.s32 %v410, %v413
      %v421 = vsub.s32 %v411, %v413
      %s422 = ssub.s32 %s395, %s391
      %v423 = vstv %s422
      %vm424 = vcmp.eq.s32.totalorder %v414, %v423
      %vm425 = vcmp.eq.s32.totalorder %v415, %v423
      %vm426 = vcmp.eq.s32.totalorder %v416, %v423
      %vm427 = vcmp.eq.s32.totalorder %v417, %v423
      %vm428 = vcmp.eq.s32.totalorder %v418, %v423
      %vm429 = vcmp.eq.s32.totalorder %v419, %v423
      %vm430 = vcmp.eq.s32.totalorder %v420, %v423
      %vm431 = vcmp.eq.s32.totalorder %v421, %v423
      %vm432 = vmor %vm355, %vm424
      %vm433 = vmor %vm356, %vm425
      %vm434 = vmor %vm357, %vm426
      %vm435 = vmor %vm358, %vm427
      %vm436 = vmor %vm359, %vm428
      %vm437 = vmor %vm360, %vm429
      %vm438 = vmor %vm361, %vm430
      %vm439 = vmor %vm362, %vm431
      %vm440 = vmpackc.low %vm425, %vm424
      %vm441 = vmpackc.low %vm427, %vm426
      %v442 = vsel %vm440, 16711935, 0
      %v443 = vsel %vm441, 16711935, 0
      %v444 = vpack.c.b8 %v443, %v442
      %vm445 = vnez %v444
      %vm446 = vmpackc.low %vm429, %vm428
      %vm447 = vmpackc.low %vm431, %vm430
      %v448 = vsel %vm446, 16711935, 0
      %v449 = vsel %vm447, 16711935, 0
      %v450 = vpack.c.b8 %v449, %v448
      %vm451 = vnez %v450
      %vm452 = vmor %vm163, %vm445
      %vm453 = vmor %vm164, %vm451
      %v454 = vsel %vm432, 0.0, %v221
      %v455 = vsel %vm433, 0.0, %v222
      %v456 = vsel %vm434, 0.0, %v223
      %v457 = vsel %vm435, 0.0, %v224
      %v458 = vsel %vm436, 0.0, %v225
      %v459 = vsel %vm437, 0.0, %v226
      %v460 = vsel %vm438, 0.0, %v227
      %v461 = vsel %vm439, 0.0, %v228
      %v462 = vsel %vm452, 16843009, 0
      %v463 = vsel %vm453, 16843009, 0
      %v464 = vunpack.c.0.s8 %v462
      %v465 = vunpack.c.1.s8 %v462
      %v466 = vunpack.c.2.s8 %v462
      %v467 = vunpack.c.3.s8 %v462
      %v468 = vunpack.c.0.s8 %v463
      %v469 = vunpack.c.1.s8 %v463
      %v470 = vunpack.c.2.s8 %v463
      %v471 = vunpack.c.3.s8 %v463
      %v472 = vpack.c.b16 %v464, %v464
      %v473 = vpack.c.b8 %v472, %v472
      %v474 = vpack.c.b16 %v465, %v465
      %v475 = vpack.c.b8 %v474, %v474
      %v476 = vpack.c.b16 %v466, %v466
      %v477 = vpack.c.b8 %v476, %v476
      %v478 = vpack.c.b16 %v467, %v467
      %v479 = vpack.c.b8 %v478, %v478
      %v480 = vpack.c.b16 %v468, %v468
      %v481 = vpack.c.b8 %v480, %v480
      %v482 = vpack.c.b16 %v469, %v469
      %v483 = vpack.c.b8 %v482, %v482
      %v484 = vpack.c.b16 %v470, %v470
      %v485 = vpack.c.b8 %v484, %v484
      %v486 = vpack.c.b16 %v471, %v471
      %v487 = vpack.c.b8 %v486, %v486
      %vm488 = vnez %v473
      %vm489 = vnez %v475
      %vm490 = vnez %v477
      %vm491 = vnez %v479
      %vm492 = vnez %v481
      %vm493 = vnez %v483
      %vm494 = vnez %v485
      %vm495 = vnez %v487
      %v496 = vsel %vm488, 16843009, 0
      %v497 = vsel %vm489, 16843009, 0
      %v498 = vsel %vm490, 16843009, 0
      %v499 = vsel %vm491, 16843009, 0
      %v500 = vsel %vm492, 16843009, 0
      %v501 = vsel %vm493, 16843009, 0
      %v502 = vsel %vm494, 16843009, 0
      %v503 = vsel %vm495, 16843009, 0
      %v504 = vunpack.c.0.s8 %v496
      %v505 = vunpack.c.0.s8 %v497
      %v506 = vunpack.c.0.s8 %v498
      %v507 = vunpack.c.0.s8 %v499
      %v508 = vunpack.c.0.s8 %v500
      %v509 = vunpack.c.0.s8 %v501
      %v510 = vunpack.c.0.s8 %v502
      %v511 = vunpack.c.0.s8 %v503
      %vm512 = vcmp.ne.s32.totalorder %v504, 0
      %vm513 = vcmp.ne.s32.totalorder %v505, 0
      %vm514 = vcmp.ne.s32.totalorder %v506, 0
      %vm515 = vcmp.ne.s32.totalorder %v507, 0
      %vm516 = vcmp.ne.s32.totalorder %v508, 0
      %vm517 = vcmp.ne.s32.totalorder %v509, 0
      %vm518 = vcmp.ne.s32.totalorder %v510, 0
      %vm519 = vcmp.ne.s32.totalorder %v511, 0
      %v520 = vsel %vm512, 0.0, %v241
      %v521 = vsel %vm513, 0.0, %v242
      %v522 = vsel %vm514, 0.0, %v243
      %v523 = vsel %vm515, 0.0, %v244
      %v524 = vsel %vm516, 0.0, %v245
      %v525 = vsel %vm517, 0.0, %v246
      %v526 = vsel %vm518, 0.0, %v247
      %v527 = vsel %vm519, 0.0, %v248
      %v528 = vadd.f32 %v454, %v520
      %v529 = vadd.f32 %v455, %v521
      %v530 = vadd.f32 %v456, %v522
      %v531 = vadd.f32 %v457, %v523
      %v532 = vadd.f32 %v458, %v524
      %v533 = vadd.f32 %v459, %v525
      %v534 = vadd.f32 %v460, %v526
      %v535 = vadd.f32 %v461, %v527
      %v536 = vld [vmem:[#allocation2] sm:$0xff]
      %v537 = vadd.f32 %v528, %v529
      %v538 = vadd.f32 %v537, %v530
      %v539 = vadd.f32 %v538, %v531
      %v540 = vadd.f32 %v539, %v532
      %v541 = vadd.f32 %v540, %v533
      %v542 = vadd.f32 %v541, %v534
      %v543 = vadd.f32 %v542, %v535
      %v544 = vadd.f32 %v536, %v543
      %545 = vst.msk [vmem:[#allocation2] sm:$0xff] %vm389, %v544
    $region29: #{tpu_custom_call.1} parent=1 // pred_fallthru
      _
    %p546 = pneg %p400
    // Predicated region
    $region30: #{tpu_custom_call.1} parent=1 // pred_check
      _
    $region31: #{tpu_custom_call.1} parent=1 // pred_check_branch
      %548 = sbr.rel (%p400) target = $region33
    $region32: #{tpu_custom_call.1} parent=1 // pred_region
      %v549 = vsel %vm355, 0.0, %v221
      %v550 = vsel %vm356, 0.0, %v222
      %v551 = vsel %vm357, 0.0, %v223
      %v552 = vsel %vm358, 0.0, %v224
      %v553 = vsel %vm359, 0.0, %v225
      %v554 = vsel %vm360, 0.0, %v226
      %v555 = vsel %vm361, 0.0, %v227
      %v556 = vsel %vm362, 0.0, %v228
      %v557 = vsel %vm347, 0.0, %v241
      %v558 = vsel %vm348, 0.0, %v242
      %v559 = vsel %vm349, 0.0, %v243
      %v560 = vsel %vm350, 0.0, %v244
      %v561 = vsel %vm351, 0.0, %v245
      %v562 = vsel %vm352, 0.0, %v246
      %v563 = vsel %vm353, 0.0, %v247
      %v564 = vsel %vm354, 0.0, %v248
      %v565 = vadd.f32 %v549, %v557
      %v566 = vadd.f32 %v550, %v558
      %v567 = vadd.f32 %v551, %v559
      %v568 = vadd.f32 %v552, %v560
      %v569 = vadd.f32 %v553, %v561
      %v570 = vadd.f32 %v554, %v562
      %v571 = vadd.f32 %v555, %v563
      %v572 = vadd.f32 %v556, %v564
      %v573 = vld [vmem:[#allocation2] sm:$0xff]
      %v574 = vadd.f32 %v565, %v566
      %v575 = vadd.f32 %v574, %v567
      %v576 = vadd.f32 %v575, %v568
      %v577 = vadd.f32 %v576, %v569
      %v578 = vadd.f32 %v577, %v570
      %v579 = vadd.f32 %v578, %v571
      %v580 = vadd.f32 %v579, %v572
      %v581 = vadd.f32 %v573, %v580
      %582 = vst.msk [vmem:[#allocation2] sm:$0xff] %vm389, %v581
    $region33: #{tpu_custom_call.1} parent=1 // pred_fallthru
      _
    // Predicated region
    $region34: #{tpu_custom_call.1} parent=1 // pred_check
      _
    $region35: #{tpu_custom_call.1} parent=1 // pred_check_branch
      %584 = sbr.rel (0) target = $region37
    $region36: #{tpu_custom_call.1} parent=1 // pred_region
      %586 = vsyncadd [#allocation3], 0
      %s587 = sshll.u32 [#allocation2], 4
      %s588 = int_to_ptr.vmem [resolvable:$true] %s587
      %s589 = sshll.u32 %s5, 4
      %s590 = int_to_ptr.hbm [resolvable:$true] %s589
      %595 = dma.vmem_to_hbm [thread:$0]  %s588, 256, %s590, [#allocation3], 128, 128, 8
    $region37: #{tpu_custom_call.1} parent=1 // pred_fallthru
      _
    // Predicated region
    $region38: #{tpu_custom_call.1} parent=1 // pred_check
      _
    $region39: #{tpu_custom_call.1} parent=1 // pred_check_branch
      %597 = sbr.rel (0) target = $region41
    $region40: #{tpu_custom_call.1} parent=1 // pred_region
      %599 = dma.done [#allocation3], 256
    $region41: #{tpu_custom_call.1} parent=1 // pred_fallthru
      _
    %600 = vsyncpa [#allocation3], 1

</llo_original>
